<compile_context>
chip_gen: v7x
topology: tpu7x:2x2x1
jax: 0.10.0
libtpu: 0.0.40
codegen_flags: <defaults>
</compile_context>

<pallas_src>
import jax
import jax.numpy as jnp
from jax import lax
from jax.experimental import pallas as pl
from jax.experimental.pallas import tpu as pltpu

MiB = 1024 * 1024
_NEG_BIG = -1e30  # bias for vocab-padding columns -> exp() underflows to 0


def _cdiv(a, b):
    return -(-a // b)


def _round_up(x, m):
    return _cdiv(x, m) * m


def _vmem_capacity_bytes():
    try:
        info = pltpu.get_tpu_info()
        cap = getattr(info, "vmem_capacity_bytes", None)
        if cap:
            return int(cap)
    except Exception:
        pass
    return 64 * MiB  # conservative (v7x-sized) fallback


# ---------------------------------------------------------------------------
# Tile selection (VMEM / generation aware)
# ---------------------------------------------------------------------------

def _block_vmem_bytes(tm, hp, tv, nv, out_bytes):
    nv_lane = _round_up(max(nv, 1), 128)      # internal lane padding of small arrays
    return int(
        2 * tm * hp * 2             # x tile (bf16), double buffered
        + 2 * hp * tv * 2           # weight tile (bf16), double buffered
        + 2 * 8 * tv * 4            # bias tile (f32, sublane padded)
        + 2 * tm * tv * out_bytes   # exp/output tile, double buffered
        + 2 * tm * nv_lane * 4      # scale table output block
        + 3 * tm * 128 * 4          # m/l scratch (lane padded) + slack
        + tm * nv_lane * 4          # per-tile max scratch
        + 3 * tm * tv * 4           # f32 logits / exp compiler temporaries
    )


def _select_tiles(m, hidden, v, out_bytes, tile_m, tile_v, budget):
    hp = max(_round_up(hidden, 128), 128)     # lane-dense contraction dim
    vmax = _round_up(v, 128)
    if tile_m is None:
        # Roofline-driven default: big parts (v5e/v6e, 128 MiB VMEM) take tm=512,
        # VMEM-limited v7x takes tm=256.
        tile_m = 512 if budget >= 72 * MiB else 256
    # Minimize row-padding waste while staying a multiple of 16 (bf16 packing).
    tm = _round_up(_cdiv(m, _cdiv(m, max(int(tile_m), 16))), 16)
    tv = min(_round_up(int(tile_v), 128), vmax)

    def fits(tm_, tv_):
        return _block_vmem_bytes(tm_, hp, tv_, _cdiv(vmax, tv_), out_bytes) <= budget

    while not fits(tm, tv) and tv > 512:      # weight block dominates: shrink tv first
        tv = _round_up(tv // 2, 128)
    while not fits(tm, tv) and tm > 64:
        tm = max(_round_up(tm // 2, 16), 16)
    while not fits(tm, tv) and tv > 128:
        tv = _round_up(tv // 2, 128)

    nv = _cdiv(vmax, tv)
    vp = nv * tv
    mp = _round_up(m, tm)
    return tm, mp, hp, tv, vp, nv


# ---------------------------------------------------------------------------
# Kernels
# ---------------------------------------------------------------------------

def _single_pass_kernel(x_ref, w_ref, b_ref, o_ref):
    # x: (tm, Hp) bf16   w: (Hp, tv) bf16   b: (1, tv) f32   o: (tm, tv)
    logits = jnp.dot(x_ref[...], w_ref[...], preferred_element_type=jnp.float32)
    logits = logits + b_ref[...]
    m = jnp.max(logits, axis=-1, keepdims=True)
    e = jnp.exp(logits - m)
    denom = jnp.sum(e, axis=-1, keepdims=True)
    # Exact divide on the tiny (tm, 1) denominator, then a cheap row-broadcast mul.
    o_ref[...] = (e * (1.0 / denom)).astype(o_ref.dtype)


def _make_pass1_kernel(nv):
    """Single MXU sweep over the V tiles of one M tile (grid = (mt, nv)).
    Writes unnormalized exp(logits - m_running) per tile and, at the last V tile,
    a per-(row, V-tile) rescale table exp(m_tile - m_final) / l_final."""

    def kernel(x_ref, w_ref, b_ref, e_ref, s_ref, m_run, l_run, m_used):
        j = pl.program_id(1)

        @pl.when(j == 0)
        def _init():
            m_run[...] = jnp.full_like(m_run, -jnp.inf)
            l_run[...] = jnp.zeros_like(l_run)
            m_used[...] = jnp.zeros_like(m_used)

        logits = jnp.dot(x_ref[...], w_ref[...], preferred_element_type=jnp.float32)
        logits = logits + b_ref[...]

        m_new = jnp.maximum(m_run[...], jnp.max(logits, axis=-1, keepdims=True))
        e = jnp.exp(logits - m_new)
        l_run[...] = l_run[...] * jnp.exp(m_run[...] - m_new) + jnp.sum(
            e, axis=-1, keepdims=True)
        m_run[...] = m_new

        # Record the max used for this V tile (column j of the (tm, nv) scratch).
        col = lax.broadcasted_iota(jnp.int32, m_used.shape, 1)
        m_used[...] = jnp.where(col == j, m_new, m_used[...])

        e_ref[...] = e.astype(e_ref.dtype)     # unnormalized write, no recompute later

        @pl.when(j == nv - 1)
        def _finalize():
            # m_run now holds the global row max; exact divide is tiny ((tm, nv)).
            s_ref[...] = jnp.exp(m_used[...] - m_run[...]) / l_run[...]

    return kernel


def _rescale_kernel(e_ref, s_ref, o_ref):
    # e: (tm, tv) unnormalized exp;  s: (tm, nv) scale table;  o aliases e in HBM.
    j = pl.program_id(1)
    col = lax.broadcasted_iota(jnp.int32, s_ref.shape, 1)
    scale = jnp.sum(jnp.where(col == j, s_ref[...], 0.0), axis=1, keepdims=True)
    o_ref[...] = (e_ref[...].astype(jnp.float32) * scale).astype(o_ref.dtype)


# ---------------------------------------------------------------------------
# pallas_call builders
# ---------------------------------------------------------------------------

def _single_pass_call(x, wt, b2, *, tm, hp, tv, out_dtype, vmem_limit):
    mp = x.shape[0]
    mt = mp // tm
    ob = jnp.dtype(out_dtype).itemsize
    cost = pl.CostEstimate(flops=int(2 * mp * hp * tv), transcendentals=int(mp * tv),
                           bytes_accessed=int(mp * hp * 2 + hp * tv * 2 + mp * tv * ob))
    return pl.pallas_call(
        _single_pass_kernel,
        out_shape=jax.ShapeDtypeStruct((mp, tv), out_dtype),
        grid_spec=pltpu.PrefetchScalarGridSpec(
            num_scalar_prefetch=0,
            grid=(mt,),
            in_specs=[
                pl.BlockSpec((tm, hp), lambda i: (i, 0)),
                pl.BlockSpec((hp, tv), lambda i: (0, 0)),   # resident across the grid
                pl.BlockSpec((1, tv), lambda i: (0, 0)),
            ],
            out_specs=pl.BlockSpec((tm, tv), lambda i: (i, 0)),
        ),
        compiler_params=pltpu.CompilerParams(
            dimension_semantics=("parallel",),
            vmem_limit_bytes=int(vmem_limit)),
        cost_estimate=cost,
    )(x, wt, b2)


def _pass1_call(x, wt, b2, *, tm, hp, tv, nv, out_dtype, vmem_limit):
    mp = x.shape[0]
    vp = wt.shape[1]
    mt = mp // tm
    ob = jnp.dtype(out_dtype).itemsize
    cost = pl.CostEstimate(
        flops=int(2 * mp * hp * vp), transcendentals=int(mp * vp),
        bytes_accessed=int(mp * hp * 2 + mt * hp * vp * 2 + mp * vp * ob + mp * nv * 4))
    return pl.pallas_call(
        _make_pass1_kernel(nv),
        out_shape=(jax.ShapeDtypeStruct((mp, vp), out_dtype),   # unnormalized exp
                   jax.ShapeDtypeStruct((mp, nv), jnp.float32)),  # rescale table
        grid_spec=pltpu.PrefetchScalarGridSpec(
            num_scalar_prefetch=0,
            grid=(mt, nv),
            in_specs=[
                pl.BlockSpec((tm, hp), lambda i, j: (i, 0)),   # x resident over j
                pl.BlockSpec((hp, tv), lambda i, j: (0, j)),
                pl.BlockSpec((1, tv), lambda i, j: (0, j)),
            ],
            out_specs=[
                pl.BlockSpec((tm, tv), lambda i, j: (i, j)),
                pl.BlockSpec((tm, nv), lambda i, j: (i, 0)),   # written at j == nv-1
            ],
            scratch_shapes=[
                pltpu.VMEM((tm, 1), jnp.float32),    # running max
                pltpu.VMEM((tm, 1), jnp.float32),    # running sum of exp
                pltpu.VMEM((tm, nv), jnp.float32),   # per-V-tile max used at write
            ],
        ),
        compiler_params=pltpu.CompilerParams(
            dimension_semantics=("parallel", "arbitrary"),
            vmem_limit_bytes=int(vmem_limit)),
        cost_estimate=cost,
    )(x, wt, b2)


def _rescale_call(e, scales, *, tm, tv, nv, out_dtype, vmem_limit):
    mp, vp = e.shape
    mt = mp // tm
    ob = jnp.dtype(out_dtype).itemsize
    cost = pl.CostEstimate(flops=int(mp * vp), transcendentals=0,
                           bytes_accessed=int(2 * mp * vp * ob + mp * nv * 4))
    return pl.pallas_call(
        _rescale_kernel,
        out_shape=jax.ShapeDtypeStruct((mp, vp), out_dtype),
        grid_spec=pltpu.PrefetchScalarGridSpec(
            num_scalar_prefetch=0,
            grid=(mt, nv),
            in_specs=[
                pl.BlockSpec((tm, tv), lambda i, j: (i, j)),
                pl.BlockSpec((tm, nv), lambda i, j: (i, 0)),
            ],
            out_specs=pl.BlockSpec((tm, tv), lambda i, j: (i, j)),
        ),
        compiler_params=pltpu.CompilerParams(
            dimension_semantics=("parallel", "arbitrary"),
            vmem_limit_bytes=int(vmem_limit)),
        cost_estimate=cost,
        input_output_aliases={0: 0},   # rescale the exp buffer in place
    )(e, scales)


# ---------------------------------------------------------------------------
# Public wrapper (forward of WordProbLayer, copy=False)
# ---------------------------------------------------------------------------

def word_prob_layer(h, w_t, b, *, tile_m=None, tile_v=2048, out_dtype=None,
                    matmul_dtype=jnp.bfloat16):
    """h: [seqlen, bsz, hidden]; w_t: [hidden, dict] (transpose of PyTorch's
    [dict, hidden]); b: [dict].  Returns (pred, dists) with
    pred = softmax(h @ w_t + b, axis=-1) and dists = None (copy=False path)."""
    seqlen, bsz, hidden = h.shape
    v = w_t.shape[1]
    assert w_t.shape[0] == hidden and b.shape == (v,)
    out_dtype = h.dtype if out_dtype is None else jnp.dtype(out_dtype)
    out_bytes = jnp.dtype(out_dtype).itemsize

    m = seqlen * bsz
    cap = _vmem_capacity_bytes()
    vmem_limit = max(min(int(0.78 * cap), cap - 12 * MiB), 16 * MiB)
    budget = int(0.9 * vmem_limit)
    tm, mp, hp, tv, vp, nv = _select_tiles(m, hidden, v, out_bytes,
                                           tile_m, tile_v, budget)

    x = h.reshape(m, hidden)
    if (mp, hp) != (m, hidden):
        x = jnp.pad(x, ((0, mp - m), (0, hp - hidden)))
    wt = w_t
    if (hp, vp) != (hidden, v):
        wt = jnp.pad(w_t, ((0, hp - hidden), (0, vp - v)))
    b2 = b.reshape(1, v).astype(jnp.float32)
    if vp != v:
        # Padded vocab columns get a hugely negative bias -> exp() == 0, so they do
        # not perturb the softmax denominator.
        b2 = jnp.pad(b2, ((0, 0), (0, vp - v)), constant_values=_NEG_BIG)

    x = x.astype(matmul_dtype)   # bf16 MXU inputs; f32 accumulation in-kernel
    wt = wt.astype(matmul_dtype)

    if nv == 1:
        out = _single_pass_call(x, wt, b2, tm=tm, hp=hp, tv=tv,
                                out_dtype=out_dtype, vmem_limit=vmem_limit)
    else:
        e, scales = _pass1_call(x, wt, b2, tm=tm, hp=hp, tv=tv, nv=nv,
                                out_dtype=out_dtype, vmem_limit=vmem_limit)
        out = _rescale_call(e, scales, tm=tm, tv=tv, nv=nv,
                            out_dtype=out_dtype, vmem_limit=vmem_limit)

    pred = out[:m, :v].reshape(seqlen, bsz, v)
    return pred, None


if __name__ == "__main__":
    # Small shapes consistent with the module: seqlen=8, bsz=2, hidden=32, dict=512.
    seqlen, bsz, hidden, dict_size = 8, 2, 32, 512

    key = jax.random.PRNGKey(0)
    k_h, k_w, k_b = jax.random.split(key, 3)

    h = jax.random.normal(k_h, (seqlen, bsz, hidden), dtype=jnp.float32)
    # Deterministic "init_linear_weight"-style parameters (synthetic, not a checkpoint).
    w = jax.random.normal(k_w, (dict_size, hidden), dtype=jnp.float32) * 0.02  # [out, in]
    b = jax.random.normal(k_b, (dict_size,), dtype=jnp.float32) * 0.02
    w_t = w.T  # kernel layout [hidden, dict]

    # Reference (same math as torch.softmax(self.proj(h), -1)), f32.
    ref = jax.nn.softmax(jnp.einsum("sbh,vh->sbv", h, w) + b, axis=-1)

    # Path 1: vocab fits in a single tile -> single-pass kernel.
    pred, dists = word_prob_layer(h, w_t, b)
    pred = jax.block_until_ready(pred)
    assert pred.shape == (seqlen, bsz, dict_size)
    assert dists is None
    assert jnp.allclose(pred, ref, atol=1e-4, rtol=2e-2), "single-pass mismatch"
    assert jnp.allclose(jnp.sum(pred, axis=-1), 1.0, atol=5e-3)

    # Path 2: force vocab tiling -> unnormalized-exp write + rescale epilogue.
    pred2, dists2 = word_prob_layer(h, w_t, b, tile_v=128)
    pred2 = jax.block_until_ready(pred2)
    assert pred2.shape == (seqlen, bsz, dict_size)
    assert dists2 is None
    assert jnp.allclose(pred2, ref, atol=1e-4, rtol=2e-2), "tiled-vocab mismatch"
    assert jnp.allclose(jnp.sum(pred2, axis=-1), 1.0, atol=5e-3)

    print("KERNEL_OK")
</pallas_src>

<mosaic_0001>
module attributes {stable_mosaic.version = 11 : i64} {
  func.func @_single_pass_kernel(%arg0: i32, %arg1: memref<16x128xbf16, #tpu.memory_space<vmem>>, %arg2: memref<128x512xbf16, #tpu.memory_space<vmem>>, %arg3: memref<1x512xf32, #tpu.memory_space<vmem>>, %arg4: memref<16x512xf32, #tpu.memory_space<vmem>>) attributes {dimension_semantics = [#tpu.dimension_semantics<parallel>], iteration_bounds = array<i64: 1>, scalar_prefetch = 0 : i64, scratch_operands = 0 : i64, tpu.core_type = #tpu.core_type<tc>, window_params = [{transform_indices = @transform_0, window_bounds = array<i64: 16, 128>}, {pipeline_mode = #tpu.pipeline_mode<synchronous>, transform_indices = @transform_1, window_bounds = array<i64: 128, 512>}, {pipeline_mode = #tpu.pipeline_mode<synchronous>, transform_indices = @transform_2, window_bounds = array<i64: 1, 512>}, {transform_indices = @transform_3, window_bounds = array<i64: 16, 512>}]} {
    %c0 = arith.constant 0 : index
    %c0_0 = arith.constant 0 : index
    %0 = vector.load %arg1[%c0, %c0_0] : memref<16x128xbf16, #tpu.memory_space<vmem>>, vector<16x128xbf16>
    %c0_1 = arith.constant 0 : index
    %c0_2 = arith.constant 0 : index
    %1 = vector.load %arg2[%c0_1, %c0_2] : memref<128x512xbf16, #tpu.memory_space<vmem>>, vector<128x512xbf16>
    %cst = arith.constant dense<0.000000e+00> : vector<16x512xf32>
    %2 = tpu.matmul %0, %1, %cst {dimension_numbers = #tpu.dot_dimension_numbers<[1], [0], [0], [1], [0, 0, 1, 1], [], []>} : vector<16x128xbf16>, vector<128x512xbf16>, vector<16x512xf32> -> vector<16x512xf32>
    %c0_3 = arith.constant 0 : index
    %c0_4 = arith.constant 0 : index
    %3 = vector.load %arg3[%c0_3, %c0_4] : memref<1x512xf32, #tpu.memory_space<vmem>>, vector<1x512xf32>
    %4 = vector.broadcast %3 : vector<1x512xf32> to vector<16x512xf32>
    %5 = arith.addf %2, %4 : vector<16x512xf32>
    %cst_5 = arith.constant dense<0xFF800000> : vector<16xf32>
    %6 = vector.multi_reduction <maximumf>, %5, %cst_5 [1] : vector<16x512xf32> to vector<16xf32>
    %7 = vector.shape_cast %6 : vector<16xf32> to vector<16x1xf32>
    %8 = vector.broadcast %7 : vector<16x1xf32> to vector<16x512xf32>
    %9 = arith.subf %5, %8 : vector<16x512xf32>
    %10 = math.exp %9 : vector<16x512xf32>
    %cst_6 = arith.constant dense<0.000000e+00> : vector<16xf32>
    %11 = vector.multi_reduction <add>, %10, %cst_6 [1] : vector<16x512xf32> to vector<16xf32>
    %12 = vector.shape_cast %11 : vector<16xf32> to vector<16x1xf32>
    %cst_7 = arith.constant 1.000000e+00 : f32
    %13 = vector.broadcast %cst_7 : f32 to vector<16x1xf32>
    %14 = arith.divf %13, %12 : vector<16x1xf32>
    %15 = vector.broadcast %14 : vector<16x1xf32> to vector<16x512xf32>
    %16 = arith.mulf %10, %15 : vector<16x512xf32>
    %c0_8 = arith.constant 0 : index
    %c0_9 = arith.constant 0 : index
    %17 = vector.load %arg4[%c0_8, %c0_9] : memref<16x512xf32, #tpu.memory_space<vmem>>, vector<16x512xf32>
    tpu.vector_store %arg4[%c0_8, %c0_9], %16 {strides = array<i32>} : memref<16x512xf32, #tpu.memory_space<vmem>>, vector<16x512xf32>,
    return
  }
  func.func @transform_0(%arg0: i32) -> (i32, i32) {
    %c0_i32 = arith.constant 0 : i32
    %c0_i32_0 = arith.constant 0 : i32
    return %arg0, %c0_i32 : i32, i32
  }
  func.func @transform_1(%arg0: i32) -> (i32, i32) {
    %c0_i32 = arith.constant 0 : i32
    %c0_i32_0 = arith.constant 0 : i32
    %c0_i32_1 = arith.constant 0 : i32
    return %c0_i32, %c0_i32_0 : i32, i32
  }
  func.func @transform_2(%arg0: i32) -> (i32, i32) {
    %c0_i32 = arith.constant 0 : i32
    %c0_i32_0 = arith.constant 0 : i32
    %c0_i32_1 = arith.constant 0 : i32
    return %c0_i32, %c0_i32_0 : i32, i32
  }
  func.func @transform_3(%arg0: i32) -> (i32, i32) {
    %c0_i32 = arith.constant 0 : i32
    %c0_i32_0 = arith.constant 0 : i32
    return %arg0, %c0_i32 : i32, i32
  }
}

</mosaic_0001>

<llo_original>
// kernel: tpu_custom_call.1
$region0: #{tpu_custom_call.1}
  #allocation0 [shape = 'u32[]', space=smem, size = 0x4, offset = 0x4, fixed_abs, tag = 'smem constant byte address 0x4 - core index']
  #allocation1 [shape = 'u32[144,128]{1,0:T(1,128)}', space=vmem, size = 0x12000, scoped, tag = 'internal scratch']
  %s0 = inlined_call_operand.hbm [shape: bf16[16,128], index: 0, kind: input, shape index: {}]
  %s1 = inlined_call_operand.hbm [shape: bf16[128,512], index: 1, kind: input, shape index: {}]
  %s2 = inlined_call_operand.vmem [shape: f32[1,512], index: 2, kind: input, shape index: {}]
  %s3 = inlined_call_operand.hbm [shape: f32[16,512], index: 3, kind: output, shape index: {}]
  %s4 = sld [smem:[#allocation0]]
  $region30: #{tpu_custom_call.1} parent=0
    _
  %s6 = ssub.s32 1, %s4
  %s7 = scalar_select 0, %s6, %s4
  $region1: #{tpu_custom_call.1} parent=0
    #allocation2 [shape = 'u8[4096]{0}', space=vmem, size = 0x1000, scoped, tag = 'input window, operand 0, single buffered']
    #allocation3 [shape = 's32[1]{0}', space=sflag, size = 0x4, scoped, tag = 'scoped memory for tpu_custom_call.1']
    #allocation4 [shape = 's32[1]{0}', space=sflag, size = 0x4, scoped, tag = 'scoped memory for tpu_custom_call.1']
    #allocation5 [shape = 'u8[131072]{0}', space=vmem, size = 0x20000, scoped, tag = 'input window, operand 1, single buffered']
    #allocation6 [shape = 's32[1]{0}', space=sflag, size = 0x4, scoped, tag = 'scoped memory for tpu_custom_call.1']
    #allocation7 [shape = 'u8[32768]{0}', space=vmem, size = 0x8000, scoped, tag = 'output window, operand 0, single buffered']
    %8 = vsyncpa [#allocation3], 0
    %9 = vsyncpa [#allocation6], 0
    %10 = vsyncpa [#allocation4], 0
    // Predicated region
    $region2: #{tpu_custom_call.1} parent=1 // pred_check
      _
    $region3: #{tpu_custom_call.1} parent=1 // pred_check_branch
      %12 = sbr.rel (0) target = $region5
    $region4: #{tpu_custom_call.1} parent=1 // pred_region
      %s14 = ssub.s32 128, 128
      %15 = vsyncadd [#allocation3], %s14
      %s16 = sshll.u32 [#allocation2], 4
      %s17 = int_to_ptr.vmem [resolvable:$true] %s16
      %22 = dma.hbm_to_vmem [thread:$0]  %s0, 128, %s17, [#allocation3], 64, 64, 4
    $region5: #{tpu_custom_call.1} parent=1 // pred_fallthru
      _
    // Predicated region
    $region6: #{tpu_custom_call.1} parent=1 // pred_check
      _
    $region7: #{tpu_custom_call.1} parent=1 // pred_check_branch
      %24 = sbr.rel (0) target = $region9
    $region8: #{tpu_custom_call.1} parent=1 // pred_region
      %s26 = ssub.s32 4096, 4096
      %27 = vsyncadd [#allocation6], %s26
      %s28 = sshll.u32 [#allocation5], 4
      %s29 = int_to_ptr.vmem [resolvable:$true] %s28
      %34 = dma.hbm_to_vmem [thread:$0]  %s1, 4096, %s29, [#allocation6], 256, 256, 16
    $region9: #{tpu_custom_call.1} parent=1 // pred_fallthru
      _
    // Predicated region
    $region10: #{tpu_custom_call.1} parent=1 // pred_check
      _
    $region11: #{tpu_custom_call.1} parent=1 // pred_check_branch
      %36 = sbr.rel (0) target = $region13
    $region12: #{tpu_custom_call.1} parent=1 // pred_region
      _
    $region13: #{tpu_custom_call.1} parent=1 // pred_fallthru
      _
    // Predicated region
    $region14: #{tpu_custom_call.1} parent=1 // pred_check
      _
    $region15: #{tpu_custom_call.1} parent=1 // pred_check_branch
      %38 = sbr.rel (0) target = $region17
    $region16: #{tpu_custom_call.1} parent=1 // pred_region
      %39 = dma.done [#allocation3], 128
    $region17: #{tpu_custom_call.1} parent=1 // pred_fallthru
      _
    // Predicated region
    $region18: #{tpu_custom_call.1} parent=1 // pred_check
      _
    $region19: #{tpu_custom_call.1} parent=1 // pred_check_branch
      %41 = sbr.rel (0) target = $region21
    $region20: #{tpu_custom_call.1} parent=1 // pred_region
      %42 = dma.done [#allocation6], 4096
    $region21: #{tpu_custom_call.1} parent=1 // pred_fallthru
      _
    %v44 = vld [vmem:[#allocation2] sm:$0xf]
    %v45 = vld [vmem:[#allocation2 + $0x4] sm:$0xf]
    %v46 = vld [vmem:[#allocation5] sm:$0xff]
    %v47 = vld [vmem:[#allocation5 + $0x8] sm:$0xff]
    %v48 = vld [vmem:[#allocation5 + $0x10] sm:$0xff]
    %v49 = vld [vmem:[#allocation5 + $0x18] sm:$0xff]
    %v50 = vld [vmem:[#allocation5 + $0x20] sm:$0xff]
    %v51 = vld [vmem:[#allocation5 + $0x28] sm:$0xff]
    %v52 = vld [vmem:[#allocation5 + $0x30] sm:$0xff]
    %v53 = vld [vmem:[#allocation5 + $0x38] sm:$0xff]
    %v54 = vld [vmem:[#allocation5 + $0x40] sm:$0xff]
    %v55 = vld [vmem:[#allocation5 + $0x48] sm:$0xff]
    %v56 = vld [vmem:[#allocation5 + $0x50] sm:$0xff]
    %v57 = vld [vmem:[#allocation5 + $0x58] sm:$0xff]
    %v58 = vld [vmem:[#allocation5 + $0x60] sm:$0xff]
    %v59 = vld [vmem:[#allocation5 + $0x68] sm:$0xff]
    %v60 = vld [vmem:[#allocation5 + $0x70] sm:$0xff]
    %v61 = vld [vmem:[#allocation5 + $0x78] sm:$0xff]
    %v62 = vld [vmem:[#allocation5 + $0x80] sm:$0xff]
    %v63 = vld [vmem:[#allocation5 + $0x88] sm:$0xff]
    %v64 = vld [vmem:[#allocation5 + $0x90] sm:$0xff]
    %v65 = vld [vmem:[#allocation5 + $0x98] sm:$0xff]
    %v66 = vld [vmem:[#allocation5 + $0xa0] sm:$0xff]
    %v67 = vld [vmem:[#allocation5 + $0xa8] sm:$0xff]
    %v68 = vld [vmem:[#allocation5 + $0xb0] sm:$0xff]
    %v69 = vld [vmem:[#allocation5 + $0xb8] sm:$0xff]
    %v70 = vld [vmem:[#allocation5 + $0xc0] sm:$0xff]
    %v71 = vld [vmem:[#allocation5 + $0xc8] sm:$0xff]
    %v72 = vld [vmem:[#allocation5 + $0xd0] sm:$0xff]
    %v73 = vld [vmem:[#allocation5 + $0xd8] sm:$0xff]
    %v74 = vld [vmem:[#allocation5 + $0xe0] sm:$0xff]
    %v75 = vld [vmem:[#allocation5 + $0xe8] sm:$0xff]
    %v76 = vld [vmem:[#allocation5 + $0xf0] sm:$0xff]
    %v77 = vld [vmem:[#allocation5 + $0xf8] sm:$0xff]
    %v78 = vld [vmem:[%s2] sm:$0xf]
    %v80 = vlaneseq
    %v81 = vshrl.u32 %v80, 7
    %v82 = vsub.s32 0, %v81
    %v83 = vrot.slane %v78, %v82
    %v84 = vlaneseq
    %v85 = vshrl.u32 %v84, 7
    %v86 = vsub.s32 1, %v85
    %v87 = vrot.slane %v78, %v86
    %v88 = vlaneseq
    %v89 = vshrl.u32 %v88, 7
    %v90 = vsub.s32 2, %v89
    %v91 = vrot.slane %v78, %v90
    %v92 = vlaneseq
    %v93 = vshrl.u32 %v92, 7
    %v94 = vsub.s32 3, %v93
    %v95 = vrot.slane %v78, %v94
    %v102 = vunpack.c.l.b16 %v44
    %v103 = vunpack.c.l.b16 %v45
    %v104 = vpack.c.b16 %v103, %v102
    %v138 = vunpack.c.l.b16 %v46
    %v139 = vunpack.c.h.b16 %v46
    %v140 = vunpack.c.l.b16 %v47
    %v141 = vunpack.c.h.b16 %v47
    %v142 = vunpack.c.l.b16 %v48
    %v143 = vunpack.c.h.b16 %v48
    %v144 = vunpack.c.l.b16 %v49
    %v145 = vunpack.c.h.b16 %v49
    %v146 = vunpack.c.l.b16 %v50
    %v147 = vunpack.c.h.b16 %v50
    %v148 = vunpack.c.l.b16 %v51
    %v149 = vunpack.c.h.b16 %v51
    %v150 = vunpack.c.l.b16 %v52
    %v151 = vunpack.c.h.b16 %v52
    %v152 = vunpack.c.l.b16 %v53
    %v153 = vunpack.c.h.b16 %v53
    %v154 = vunpack.c.l.b16 %v54
    %v155 = vunpack.c.h.b16 %v54
    %v156 = vunpack.c.l.b16 %v55
    %v157 = vunpack.c.h.b16 %v55
    %v158 = vunpack.c.l.b16 %v56
    %v159 = vunpack.c.h.b16 %v56
    %v160 = vunpack.c.l.b16 %v57
    %v161 = vunpack.c.h.b16 %v57
    %v162 = vunpack.c.l.b16 %v58
    %v163 = vunpack.c.h.b16 %v58
    %v164 = vunpack.c.l.b16 %v59
    %v165 = vunpack.c.h.b16 %v59
    %v166 = vunpack.c.l.b16 %v60
    %v167 = vunpack.c.h.b16 %v60
    %v168 = vunpack.c.l.b16 %v61
    %v169 = vunpack.c.h.b16 %v61
    %v170 = vunpack.c.l.b16 %v62
    %v171 = vunpack.c.h.b16 %v62
    %v172 = vunpack.c.l.b16 %v63
    %v173 = vunpack.c.h.b16 %v63
    %v174 = vunpack.c.l.b16 %v64
    %v175 = vunpack.c.h.b16 %v64
    %v176 = vunpack.c.l.b16 %v65
    %v177 = vunpack.c.h.b16 %v65
    %v178 = vunpack.c.l.b16 %v66
    %v179 = vunpack.c.h.b16 %v66
    %v180 = vunpack.c.l.b16 %v67
    %v181 = vunpack.c.h.b16 %v67
    %v182 = vunpack.c.l.b16 %v68
    %v183 = vunpack.c.h.b16 %v68
    %v184 = vunpack.c.l.b16 %v69
    %v185 = vunpack.c.h.b16 %v69
    %v186 = vunpack.c.l.b16 %v70
    %v187 = vunpack.c.h.b16 %v70
    %v188 = vunpack.c.l.b16 %v71
    %v189 = vunpack.c.h.b16 %v71
    %v190 = vunpack.c.l.b16 %v72
    %v191 = vunpack.c.h.b16 %v72
    %v192 = vunpack.c.l.b16 %v73
    %v193 = vunpack.c.h.b16 %v73
    %v194 = vunpack.c.l.b16 %v74
    %v195 = vunpack.c.h.b16 %v74
    %v196 = vunpack.c.l.b16 %v75
    %v197 = vunpack.c.h.b16 %v75
    %v198 = vunpack.c.l.b16 %v76
    %v199 = vunpack.c.h.b16 %v76
    %v200 = vunpack.c.l.b16 %v77
    %v201 = vunpack.c.h.b16 %v77
    %v202 = vpack.c.b16 %v142, %v138
    %v203 = vpack.c.b16 %v143, %v139
    %v204 = vpack.c.b16 %v144, %v140
    %v205 = vpack.c.b16 %v145, %v141
    %v206 = vpack.c.b16 %v150, %v146
    %v207 = vpack.c.b16 %v151, %v147
    %v208 = vpack.c.b16 %v152, %v148
    %v209 = vpack.c.b16 %v153, %v149
    %v210 = vpack.c.b16 %v158, %v154
    %v211 = vpack.c.b16 %v159, %v155
    %v212 = vpack.c.b16 %v160, %v156
    %v213 = vpack.c.b16 %v161, %v157
    %v214 = vpack.c.b16 %v166, %v162
    %v215 = vpack.c.b16 %v167, %v163
    %v216 = vpack.c.b16 %v168, %v164
    %v217 = vpack.c.b16 %v169, %v165
    %v218 = vpack.c.b16 %v174, %v170
    %v219 = vpack.c.b16 %v175, %v171
    %v220 = vpack.c.b16 %v176, %v172
    %v221 = vpack.c.b16 %v177, %v173
    %v222 = vpack.c.b16 %v182, %v178
    %v223 = vpack.c.b16 %v183, %v179
    %v224 = vpack.c.b16 %v184, %v180
    %v225 = vpack.c.b16 %v185, %v181
    %v226 = vpack.c.b16 %v190, %v186
    %v227 = vpack.c.b16 %v191, %v187
    %v228 = vpack.c.b16 %v192, %v188
    %v229 = vpack.c.b16 %v193, %v189
    %v230 = vpack.c.b16 %v198, %v194
    %v231 = vpack.c.b16 %v199, %v195
    %v232 = vpack.c.b16 %v200, %v196
    %v233 = vpack.c.b16 %v201, %v197
    %266 = vmatprep.subr.bf16.mxu0 %v203
    %267 = vmatpush1.bf16.msra.mxu0 %v202
    %268 = vmatprep.subr.bf16.mxu0 %v207
    %269 = vmatpush1.bf16.msra.mxu0 %v206
    %270 = vmatprep.subr.bf16.mxu0 %v211
    %271 = vmatpush1.bf16.msra.mxu0 %v210
    %272 = vmatprep.subr.bf16.mxu0 %v215
    %273 = vmatpush1.bf16.msra.mxu0 %v214
    %274 = vmatprep.subr.bf16.mxu0 %v219
    %275 = vmatpush1.bf16.msra.mxu0 %v218
    %276 = vmatprep.subr.bf16.mxu0 %v223
    %277 = vmatpush1.bf16.msra.mxu0 %v222
    %278 = vmatprep.subr.bf16.mxu0 %v227
    %279 = vmatpush1.bf16.msra.mxu0 %v226
    %280 = vmatprep.subr.bf16.mxu0 %v231
    %281 = vmatpush1.bf16.msra.mxu0 %v230
    %282 = vmatprep.subr.bf16.mxu0 0
    %283 = vmatpush1.bf16.msra.mxu0 0
    %284 = vmatprep.subr.bf16.mxu0 0
    %285 = vmatpush1.bf16.msra.mxu0 0
    %286 = vmatprep.subr.bf16.mxu0 0
    %287 = vmatpush1.bf16.msra.mxu0 0
    %288 = vmatprep.subr.bf16.mxu0 0
    %289 = vmatpush1.bf16.msra.mxu0 0
    %290 = vmatprep.subr.bf16.mxu0 0
    %291 = vmatpush1.bf16.msra.mxu0 0
    %292 = vmatprep.subr.bf16.mxu0 0
    %293 = vmatpush1.bf16.msra.mxu0 0
    %294 = vmatprep.subr.bf16.mxu0 0
    %295 = vmatpush1.bf16.msra.mxu0 0
    %296 = vmatprep.subr.bf16.mxu0 0
    %297 = vmatpush1.bf16.msra.mxu0 0
    %298 = vmatprep.mubr.bf16.mxu0 0
    %299 = vmatmul.mubr.bf16.gmra.mrb[0].mxu0 %v104
    %v300 = vpop.f32.mrb[0].mxu0
    %v301 = vadd.f32 %v83, %v300
    %v302 = vpop.f32.mrb[0].mxu0
    %v303 = vadd.f32 %v87, %v302
    %v304 = vpop.f32.mrb[0].mxu0
    %v305 = vadd.f32 %v83, %v304
    %v306 = vpop.f32.mrb[0].mxu0
    %v307 = vadd.f32 %v87, %v306
    %308 = vdwg.mxu0
    %309 = vmatprep.subr.bf16.mxu0 %v205
    %310 = vmatpush1.bf16.msra.mxu0 %v204
    %311 = vmatprep.subr.bf16.mxu0 %v209
    %312 = vmatpush1.bf16.msra.mxu0 %v208
    %313 = vmatprep.subr.bf16.mxu0 %v213
    %314 = vmatpush1.bf16.msra.mxu0 %v212
    %315 = vmatprep.subr.bf16.mxu0 %v217
    %316 = vmatpush1.bf16.msra.mxu0 %v216
    %317 = vmatprep.subr.bf16.mxu0 %v221
    %318 = vmatpush1.bf16.msra.mxu0 %v220
    %319 = vmatprep.subr.bf16.mxu0 %v225
    %320 = vmatpush1.bf16.msra.mxu0 %v224
    %321 = vmatprep.subr.bf16.mxu0 %v229
    %322 = vmatpush1.bf16.msra.mxu0 %v228
    %323 = vmatprep.subr.bf16.mxu0 %v233
    %324 = vmatpush1.bf16.msra.mxu0 %v232
    %325 = vmatprep.subr.bf16.mxu0 0
    %326 = vmatpush1.bf16.msra.mxu0 0
    %327 = vmatprep.subr.bf16.mxu0 0
    %328 = vmatpush1.bf16.msra.mxu0 0
    %329 = vmatprep.subr.bf16.mxu0 0
    %330 = vmatpush1.bf16.msra.mxu0 0
    %331 = vmatprep.subr.bf16.mxu0 0
    %332 = vmatpush1.bf16.msra.mxu0 0
    %333 = vmatprep.subr.bf16.mxu0 0
    %334 = vmatpush1.bf16.msra.mxu0 0
    %335 = vmatprep.subr.bf16.mxu0 0
    %336 = vmatpush1.bf16.msra.mxu0 0
    %337 = vmatprep.subr.bf16.mxu0 0
    %338 = vmatpush1.bf16.msra.mxu0 0
    %339 = vmatprep.subr.bf16.mxu0 0
    %340 = vmatpush1.bf16.msra.mxu0 0
    %341 = vmatprep.mubr.bf16.mxu0 0
    %342 = vmatmul.mubr.bf16.gmra.mrb[0].mxu0 %v104
    %v343 = vpop.f32.mrb[0].mxu0
    %v344 = vadd.f32 %v91, %v343
    %v345 = vpop.f32.mrb[0].mxu0
    %v346 = vadd.f32 %v95, %v345
    %v347 = vpop.f32.mrb[0].mxu0
    %v348 = vadd.f32 %v91, %v347
    %v349 = vpop.f32.mrb[0].mxu0
    %v350 = vadd.f32 %v95, %v349
    %351 = vdwg.mxu0
    %v352 = vmax.f32 %v301, %v344
    %v353 = vmax.f32 %v303, %v346
    %v354 = vmax.f32 %v352, %v353
    %355 = vmax.xlane.f32.xlu0 %v354
    %v356 = vpop.xlane.xlu0 %355
    %v357 = vmax.f32 %v305, %v348
    %v358 = vmax.f32 %v307, %v350
    %v359 = vmax.f32 %v357, %v358
    %360 = vmax.xlane.f32.xlu0 %v359
    %v361 = vpop.xlane.xlu0 %360
    %v362 = vsub.f32 %v301, %v356
    %v363 = vsub.f32 %v303, %v356
    %v364 = vsub.f32 %v344, %v356
    %v365 = vsub.f32 %v346, %v356
    %v366 = vsub.f32 %v305, %v361
    %v367 = vsub.f32 %v307, %v361
    %v368 = vsub.f32 %v348, %v361
    %v369 = vsub.f32 %v350, %v361
    %v370 = vmul.f32 %v362, 1.442695
    %v371 = vpow.pop %v370
    %v372 = vmul.f32 %v363, 1.442695
    %v373 = vpow.pop %v372
    %v374 = vmul.f32 %v364, 1.442695
    %v375 = vpow.pop %v374
    %v376 = vmul.f32 %v365, 1.442695
    %v377 = vpow.pop %v376
    %v378 = vmul.f32 %v366, 1.442695
    %v379 = vpow.pop %v378
    %v380 = vmul.f32 %v367, 1.442695
    %v381 = vpow.pop %v380
    %v382 = vmul.f32 %v368, 1.442695
    %v383 = vpow.pop %v382
    %v384 = vmul.f32 %v369, 1.442695
    %v385 = vpow.pop %v384
    %v386 = vadd.f32 %v371, %v373
    %v387 = vadd.f32 %v386, %v375
    %v388 = vadd.f32 %v387, %v377
    %389 = vadd.xlane.f32.xlu0 %v388
    %v390 = vpop.xlane.xlu0 %389
    %v391 = vadd.f32 %v379, %v381
    %v392 = vadd.f32 %v391, %v383
    %v393 = vadd.f32 %v392, %v385
    %394 = vadd.xlane.f32.xlu0 %v393
    %v395 = vpop.xlane.xlu0 %394
    %v396 = vrcp.pop %v390
    %v397 = vmul.f32 1.0, %v396
    %v398 = vrcp.pop %v395
    %v399 = vmul.f32 1.0, %v398
    %v400 = vmul.f32 %v371, %v397
    %v401 = vmul.f32 %v373, %v397
    %v402 = vmul.f32 %v375, %v397
    %v403 = vmul.f32 %v377, %v397
    %v404 = vmul.f32 %v379, %v399
    %v405 = vmul.f32 %v381, %v399
    %v406 = vmul.f32 %v383, %v399
    %v407 = vmul.f32 %v385, %v399
    %408 = vst [vmem:[#allocation7] sm:$0xff] %v400
    %409 = vst [vmem:[#allocation7 + $0x8] sm:$0xff] %v401
    %410 = vst [vmem:[#allocation7 + $0x10] sm:$0xff] %v402
    %411 = vst [vmem:[#allocation7 + $0x18] sm:$0xff] %v403
    %412 = vst [vmem:[#allocation7 + $0x20] sm:$0xff] %v404
    %413 = vst [vmem:[#allocation7 + $0x28] sm:$0xff] %v405
    %414 = vst [vmem:[#allocation7 + $0x30] sm:$0xff] %v406
    %415 = vst [vmem:[#allocation7 + $0x38] sm:$0xff] %v407
    // Predicated region
    $region22: #{tpu_custom_call.1} parent=1 // pred_check
      _
    $region23: #{tpu_custom_call.1} parent=1 // pred_check_branch
      %417 = sbr.rel (0) target = $region25
    $region24: #{tpu_custom_call.1} parent=1 // pred_region
      %s419 = ssub.s32 1024, 1024
      %420 = vsyncadd [#allocation4], %s419
      %s421 = sshll.u32 [#allocation7], 4
      %s422 = int_to_ptr.vmem [resolvable:$true] %s421
      %427 = dma.vmem_to_hbm [thread:$0]  %s422, 1024, %s3, [#allocation4], 512, 512, 32
    $region25: #{tpu_custom_call.1} parent=1 // pred_fallthru
      _
    // Predicated region
    $region26: #{tpu_custom_call.1} parent=1 // pred_check
      _
    $region27: #{tpu_custom_call.1} parent=1 // pred_check_branch
      %429 = sbr.rel (0) target = $region29
    $region28: #{tpu_custom_call.1} parent=1 // pred_region
      %430 = dma.done [#allocation4], 1024
    $region29: #{tpu_custom_call.1} parent=1 // pred_fallthru
      _
    %431 = vsyncpa [#allocation3], 1
    %432 = vsyncpa [#allocation6], 1
    %433 = vsyncpa [#allocation4], 1

</llo_original>
